<compile_context>
chip_gen: v7x
topology: tpu7x:2x2x1
jax: 0.10.0
libtpu: 0.0.40
codegen_flags: <defaults>
</compile_context>

<pallas_src>
import math
import functools

import jax
import jax.numpy as jnp
from jax.experimental import pallas as pl
from jax.experimental.pallas import tpu as pltpu

_TWO_PI = 2.0 * math.pi


def _fourier_kernel_fused(x_ref, b_ref, o_ref, *, mapping_size):
    # x_ref: (TN, K)   b_ref: (K, M)   o_ref: (TN, 2*M), M % 128 == 0
    # Scale the tiny (K, M) B tile, NOT the (TN, M) projection (VALU is the
    # binding slot because of the sin/cos polynomial chains).
    b2pi = b_ref[...] * _TWO_PI
    # Projection on the MXU (idle filler slot here), f32 accumulation.
    proj = jnp.dot(x_ref[...], b2pi, preferred_element_type=jnp.float32)
    # Lane-dense stores: both halves start at a multiple of 128 lanes.
    o_ref[:, :mapping_size] = jnp.sin(proj).astype(o_ref.dtype)
    o_ref[:, mapping_size:] = jnp.cos(proj).astype(o_ref.dtype)


def _fourier_kernel_split(x_ref, b_ref, sin_ref, cos_ref):
    # x_ref: (TN, K)   b_ref: (K, TM)   sin_ref/cos_ref: (TN, TM)
    b2pi = b_ref[...] * _TWO_PI
    proj = jnp.dot(x_ref[...], b2pi, preferred_element_type=jnp.float32)
    sin_ref[...] = jnp.sin(proj).astype(sin_ref.dtype)
    cos_ref[...] = jnp.cos(proj).astype(cos_ref.dtype)


def _round_up(a, b):
    return -(-a // b) * b


def _pick_tile_n(n_rows, requested):
    """Row tile: large (default 512, a multiple of 256 for v6e MXU rows), but
    clamped so small/moderate N keeps padding low and the grid still has >= 2
    parallel steps for v7x's two TensorCores when N is big enough."""
    requested = max(8, (requested // 8) * 8)
    half = _round_up(max(1, _round_up(n_rows, 2) // 2), 8)
    return max(8, min(requested, half))


def fourier_feature(x, B, *, tile_n=512, tile_m=512, out_dtype=None):
    """x: (N, in_features), B: (in_features, mapping_size) ->
    (N, 2*mapping_size) = concat([sin(2*pi*x@B), cos(2*pi*x@B)], axis=-1)."""
    N, K = x.shape
    K2, M = B.shape
    assert K == K2, (K, K2)
    assert tile_m % 128 == 0, "tile_m must be a multiple of 128 (lane width)"
    out_dtype = out_dtype or x.dtype

    # ---- Row tiling (pad N up to a multiple of the row tile; glue outside). --
    tn = _pick_tile_n(N, tile_n)
    n_pad = (-N) % tn
    x_p = jnp.pad(x, ((0, n_pad), (0, 0))) if n_pad else x
    Np = x_p.shape[0]
    grid_rows = Np // tn

    # ---- Fused single-output path (lane-dense column slices at M). ----------
    # Rough per-step VMEM estimate: 2x double-buffered (tn, 2M) f32 output
    # + proj + sin/cos temporaries ~= 28 * tn * M bytes.  Keep well under the
    # 32 MiB scoped-VMEM default (v7x physical VMEM is only 64 MiB).
    fused_vmem_est = 28 * tn * M * 4 // 4  # bytes (f32 elements already *4 below)
    fused_vmem_est = 28 * tn * M           # bytes
    use_fused = (M % 128 == 0) and (fused_vmem_est <= 24 * 1024 * 1024)

    if use_fused:
        out = pl.pallas_call(
            functools.partial(_fourier_kernel_fused, mapping_size=M),
            out_shape=jax.ShapeDtypeStruct((Np, 2 * M), out_dtype),
            grid_spec=pltpu.PrefetchScalarGridSpec(
                num_scalar_prefetch=0,
                grid=(grid_rows,),
                in_specs=[
                    pl.BlockSpec((tn, K), lambda i: (i, 0)),   # x row tile
                    pl.BlockSpec((K, M), lambda i: (0, 0)),    # full B (few KiB)
                ],
                out_specs=pl.BlockSpec((tn, 2 * M), lambda i: (i, 0)),
            ),
            compiler_params=pltpu.CompilerParams(
                dimension_semantics=("parallel",),
            ),
        )(x_p, B)
        return out[:N] if n_pad else out

    # ---- Split path: two outputs, optional M blocking (large or ragged M). --
    if M <= tile_m:
        tm, m_pad = M, 0          # full-M block (legal even if M % 128 != 0)
    else:
        tm = tile_m
        m_pad = (-M) % tm
    B_p = jnp.pad(B, ((0, 0), (0, m_pad))) if m_pad else B
    Mp = B_p.shape[1]
    grid = (grid_rows, Mp // tm)

    sin_o, cos_o = pl.pallas_call(
        _fourier_kernel_split,
        out_shape=(
            jax.ShapeDtypeStruct((Np, Mp), out_dtype),
            jax.ShapeDtypeStruct((Np, Mp), out_dtype),
        ),
        grid_spec=pltpu.PrefetchScalarGridSpec(
            num_scalar_prefetch=0,
            grid=grid,
            in_specs=[
                pl.BlockSpec((tn, K), lambda i, j: (i, 0)),
                pl.BlockSpec((K, tm), lambda i, j: (0, j)),
            ],
            out_specs=[
                pl.BlockSpec((tn, tm), lambda i, j: (i, j)),
                pl.BlockSpec((tn, tm), lambda i, j: (i, j)),
            ],
        ),
        compiler_params=pltpu.CompilerParams(
            dimension_semantics=("parallel", "parallel"),
        ),
    )(x_p, B_p)

    sin_o = sin_o[:N, :M]
    cos_o = cos_o[:N, :M]
    # Concatenation (one extra HBM pass) only on the non-lane-aligned / huge-M
    # path; the common (M % 128 == 0, moderate M) case uses the fused kernel.
    return jnp.concatenate([sin_o, cos_o], axis=-1)


def fourier_feature_ref(x, B):
    proj = _TWO_PI * (x @ B)
    return jnp.concatenate([jnp.sin(proj), jnp.cos(proj)], axis=-1)


if __name__ == "__main__":
    key = jax.random.PRNGKey(0)
    k_x, k_b, k_x2, k_b2 = jax.random.split(key, 4)

    # --- Main check: default-ish PINN sizes (small), fused lane-dense path. --
    in_features = 4        # e.g. (x, y, z, t) PINN coordinates
    mapping_size = 128     # small version of the default 256 (multiple of 128)
    scale = 10.0
    N = 8                  # batch of collocation points

    # Deterministic "parameter" init mirroring nn.Parameter(randn * scale).
    B = jax.random.normal(k_b, (in_features, mapping_size), jnp.float32) * scale
    x = jax.random.normal(k_x, (N, in_features), jnp.float32)

    out = fourier_feature(x, B)
    out = jax.block_until_ready(out)
    ref = fourier_feature_ref(x, B)
    assert out.shape == (N, 2 * mapping_size), out.shape
    assert jnp.allclose(out, ref, atol=1e-4, rtol=1e-5), float(
        jnp.max(jnp.abs(out - ref))
    )

    # --- Secondary check: non-128-multiple M exercises the split path. ------
    M2, N2 = 96, 13
    B2 = jax.random.normal(k_b2, (in_features, M2), jnp.float32) * scale
    x2 = jax.random.normal(k_x2, (N2, in_features), jnp.float32)
    out2 = jax.block_until_ready(fourier_feature(x2, B2))
    ref2 = fourier_feature_ref(x2, B2)
    assert out2.shape == (N2, 2 * M2), out2.shape
    assert jnp.allclose(out2, ref2, atol=1e-4, rtol=1e-5), float(
        jnp.max(jnp.abs(out2 - ref2))
    )

    print("KERNEL_OK")
</pallas_src>

<mosaic_0001>
module attributes {stable_mosaic.version = 11 : i64} {
  func.func @_fourier_kernel_fused(%arg0: i32, %arg1: memref<8x4xf32, #tpu.memory_space<vmem>>, %arg2: memref<4x128xf32, #tpu.memory_space<vmem>>, %arg3: memref<8x256xf32, #tpu.memory_space<vmem>>) attributes {dimension_semantics = [#tpu.dimension_semantics<parallel>], iteration_bounds = array<i64: 1>, scalar_prefetch = 0 : i64, scratch_operands = 0 : i64, tpu.core_type = #tpu.core_type<tc>, window_params = [{transform_indices = @transform_0, window_bounds = array<i64: 8, 4>}, {pipeline_mode = #tpu.pipeline_mode<synchronous>, transform_indices = @transform_1, window_bounds = array<i64: 4, 128>}, {transform_indices = @transform_2, window_bounds = array<i64: 8, 256>}]} {
    %c0 = arith.constant 0 : index
    %c0_0 = arith.constant 0 : index
    %0 = vector.load %arg2[%c0, %c0_0] : memref<4x128xf32, #tpu.memory_space<vmem>>, vector<4x128xf32>
    %cst = arith.constant 6.28318548 : f32
    %1 = vector.broadcast %cst : f32 to vector<4x128xf32>
    %2 = arith.mulf %0, %1 : vector<4x128xf32>
    %c0_1 = arith.constant 0 : index
    %c0_2 = arith.constant 0 : index
    %3 = vector.load %arg1[%c0_1, %c0_2] : memref<8x4xf32, #tpu.memory_space<vmem>>, vector<8x4xf32>
    %cst_3 = arith.constant dense<0.000000e+00> : vector<8x128xf32>
    %4 = tpu.matmul %3, %2, %cst_3 {dimension_numbers = #tpu.dot_dimension_numbers<[1], [0], [0], [1], [0, 0, 1, 1], [], []>} : vector<8x4xf32>, vector<4x128xf32>, vector<8x128xf32> -> vector<8x128xf32>
    %5 = math.sin %4 : vector<8x128xf32>
    %c0_4 = arith.constant 0 : index
    %c0_5 = arith.constant 0 : index
    %6 = vector.load %arg3[%c0_4, %c0_5] : memref<8x256xf32, #tpu.memory_space<vmem>>, vector<8x128xf32>
    tpu.vector_store %arg3[%c0_4, %c0_5], %5 {strides = array<i32>} : memref<8x256xf32, #tpu.memory_space<vmem>>, vector<8x128xf32>,
    %7 = math.cos %4 : vector<8x128xf32>
    %c0_6 = arith.constant 0 : index
    %c128 = arith.constant 128 : index
    %8 = vector.load %arg3[%c0_6, %c128] : memref<8x256xf32, #tpu.memory_space<vmem>>, vector<8x128xf32>
    tpu.vector_store %arg3[%c0_6, %c128], %7 {strides = array<i32>} : memref<8x256xf32, #tpu.memory_space<vmem>>, vector<8x128xf32>,
    return
  }
  func.func @transform_0(%arg0: i32) -> (i32, i32) {
    %c0_i32 = arith.constant 0 : i32
    %c0_i32_0 = arith.constant 0 : i32
    return %arg0, %c0_i32 : i32, i32
  }
  func.func @transform_1(%arg0: i32) -> (i32, i32) {
    %c0_i32 = arith.constant 0 : i32
    %c0_i32_0 = arith.constant 0 : i32
    %c0_i32_1 = arith.constant 0 : i32
    return %c0_i32, %c0_i32_0 : i32, i32
  }
  func.func @transform_2(%arg0: i32) -> (i32, i32) {
    %c0_i32 = arith.constant 0 : i32
    %c0_i32_0 = arith.constant 0 : i32
    return %arg0, %c0_i32 : i32, i32
  }
}

</mosaic_0001>

<llo_original>
// kernel: tpu_custom_call.1
$region0: #{tpu_custom_call.1}
  #allocation0 [shape = 'u32[]', space=smem, size = 0x4, offset = 0x4, fixed_abs, tag = 'smem constant byte address 0x4 - core index']
  #allocation1 [shape = 'u32[144,128]{1,0:T(1,128)}', space=vmem, size = 0x12000, scoped, tag = 'internal scratch']
  %s0 = inlined_call_operand.vmem [shape: f32[8,4], index: 0, kind: input, shape index: {}]
  %s1 = inlined_call_operand.vmem [shape: f32[4,128], index: 1, kind: input, shape index: {}]
  %s2 = inlined_call_operand.hbm [shape: f32[8,256], index: 2, kind: output, shape index: {}]
  %s3 = sld [smem:[#allocation0]]
  $region18: #{tpu_custom_call.1} parent=0
    _
  %s5 = ssub.s32 1, %s3
  %s6 = scalar_select 0, %s5, %s3
  $region1: #{tpu_custom_call.1} parent=0
    #allocation2 [shape = 'u8[8192]{0}', space=vmem, size = 0x2000, scoped, tag = 'output window, operand 0, single buffered']
    #allocation3 [shape = 's32[1]{0}', space=sflag, size = 0x4, scoped, tag = 'scoped memory for tpu_custom_call.1']
    %7 = vsyncpa [#allocation3], 0
    // Predicated region
    $region2: #{tpu_custom_call.1} parent=1 // pred_check
      _
    $region3: #{tpu_custom_call.1} parent=1 // pred_check_branch
      %9 = sbr.rel (0) target = $region5
    $region4: #{tpu_custom_call.1} parent=1 // pred_region
      _
    $region5: #{tpu_custom_call.1} parent=1 // pred_fallthru
      _
    // Predicated region
    $region6: #{tpu_custom_call.1} parent=1 // pred_check
      _
    $region7: #{tpu_custom_call.1} parent=1 // pred_check_branch
      %11 = sbr.rel (0) target = $region9
    $region8: #{tpu_custom_call.1} parent=1 // pred_region
      _
    $region9: #{tpu_custom_call.1} parent=1 // pred_fallthru
      _
    %v12 = vld [vmem:[%s1] sm:$0xf]
    %v13 = vmul.f32 %v12, 6.2831855
    %v14 = vld [vmem:[%s0] sm:$0xff]
    %vm15 = vcmask 31744
    %v17 = vsel %vm15, %v14, 0
    %vm19 = vcmask 1043456
    %v21 = vsel %vm19, %v13, 0
    %23 = vmatprep.subr.mxu0 0.0
    %24 = vmatpush1.msra.mxu0 %v21
    %25 = vmatprep.subr.mxu0 0.0
    %26 = vmatpush1.msra.mxu0 0.0
    %27 = vmatprep.subr.mxu0 0.0
    %28 = vmatpush1.msra.mxu0 0.0
    %29 = vmatprep.subr.mxu0 0.0
    %30 = vmatpush1.msra.mxu0 0.0
    %31 = vmatprep.subr.mxu0 0.0
    %32 = vmatpush1.msra.mxu0 0.0
    %33 = vmatprep.subr.mxu0 0.0
    %34 = vmatpush1.msra.mxu0 0.0
    %35 = vmatprep.subr.mxu0 0.0
    %36 = vmatpush1.msra.mxu0 0.0
    %37 = vmatprep.subr.mxu0 0.0
    %38 = vmatpush1.msra.mxu0 0.0
    %39 = vmatprep.subr.mxu0 0.0
    %40 = vmatpush1.msra.mxu0 0.0
    %41 = vmatprep.subr.mxu0 0.0
    %42 = vmatpush1.msra.mxu0 0.0
    %43 = vmatprep.subr.mxu0 0.0
    %44 = vmatpush1.msra.mxu0 0.0
    %45 = vmatprep.subr.mxu0 0.0
    %46 = vmatpush1.msra.mxu0 0.0
    %47 = vmatprep.subr.mxu0 0.0
    %48 = vmatpush1.msra.mxu0 0.0
    %49 = vmatprep.subr.mxu0 0.0
    %50 = vmatpush1.msra.mxu0 0.0
    %51 = vmatprep.subr.mxu0 0.0
    %52 = vmatpush1.msra.mxu0 0.0
    %53 = vmatprep.subr.mxu0 0.0
    %54 = vmatpush1.msra.mxu0 0.0
    %55 = vmatprep.subr.mxu0 0.0
    %56 = vmatpush1.msra.mxu0 0.0
    %57 = vmatprep.subr.mxu0 0.0
    %58 = vmatpush1.msra.mxu0 0.0
    %59 = vmatprep.subr.mxu0 0.0
    %60 = vmatpush1.msra.mxu0 0.0
    %61 = vmatprep.subr.mxu0 0.0
    %62 = vmatpush1.msra.mxu0 0.0
    %63 = vmatprep.subr.mxu0 0.0
    %64 = vmatpush1.msra.mxu0 0.0
    %65 = vmatprep.subr.mxu0 0.0
    %66 = vmatpush1.msra.mxu0 0.0
    %67 = vmatprep.subr.mxu0 0.0
    %68 = vmatpush1.msra.mxu0 0.0
    %69 = vmatprep.subr.mxu0 0.0
    %70 = vmatpush1.msra.mxu0 0.0
    %71 = vmatprep.subr.mxu0 0.0
    %72 = vmatpush1.msra.mxu0 0.0
    %73 = vmatprep.subr.mxu0 0.0
    %74 = vmatpush1.msra.mxu0 0.0
    %75 = vmatprep.subr.mxu0 0.0
    %76 = vmatpush1.msra.mxu0 0.0
    %77 = vmatprep.subr.mxu0 0.0
    %78 = vmatpush1.msra.mxu0 0.0
    %79 = vmatprep.subr.mxu0 0.0
    %80 = vmatpush1.msra.mxu0 0.0
    %81 = vmatprep.subr.mxu0 0.0
    %82 = vmatpush1.msra.mxu0 0.0
    %83 = vmatprep.subr.mxu0 0.0
    %84 = vmatpush1.msra.mxu0 0.0
    %85 = vmatprep.subr.mxu0 0.0
    %86 = vmatpush1.msra.mxu0 0.0
    %87 = vmatprep.mubr.f32.mxu0 0.0
    %88 = vmatmul.mubr.f32.gmra.mrb[0].mxu0 %v17
    %v89 = vpop.f32.mrb[0].mxu0
    %v90 = vadd.f32 0.0, %v89
    %v91 = vpop.f32.mrb[0].mxu0
    %92 = vdwg.mxu0
    %v93 = vand.u32 2147483647, %v90
    %vm94 = vcmp.le.f32.partialorder %v93, 0.7853982
    %vm95 = vcmp.lt.s32.totalorder %v90, 0
    %v96 = vand.u32 %v90, 2139095040
    %v97 = vshrl.u32 %v96, 23
    %v98 = vsub.s32 %v97, 127
    %v99 = vand.u32 2147483647, %v90
    %v100 = vand.u32 %v99, 8388607
    %v101 = vor.u32 %v100, 8388608
    %v102 = vsub.s32 0, %v101
    %v103 = vadd.s32 %v98, 1
    %vm104 = vcmp.gt.s32.totalorder %v103, 0
    %v105 = vsel %vm104, %v103, 0
    %v106 = vshrl.u32 %v105, 5
    %v107 = vand.u32 %v105, 31
    %v108 = vsub.s32 32, %v107
    %v109 = vshrl.u32 683565275, %v108
    %v110 = vshll.u32 683565275, %v107
    %v111 = vshrl.u32 2475754826, %v108
    %v112 = vor.u32 %v110, %v111
    %v113 = vshll.u32 2475754826, %v107
    %v114 = vshrl.u32 2131351028, %v108
    %v115 = vor.u32 %v113, %v114
    %v116 = vshll.u32 2131351028, %v107
    %v117 = vshrl.u32 2102212464, %v108
    %v118 = vor.u32 %v116, %v117
    %v119 = vshll.u32 2102212464, %v107
    %v120 = vshrl.u32 920167782, %v108
    %v121 = vor.u32 %v119, %v120
    %v122 = vshll.u32 920167782, %v107
    %v123 = vshrl.u32 1326507024, %v108
    %v124 = vor.u32 %v122, %v123
    %vm125 = vcmp.lt.s32.totalorder %v106, 1
    %vm126 = vcmp.lt.s32.totalorder %v106, 2
    %vm127 = vcmp.lt.s32.totalorder %v106, 3
    %vm128 = vcmp.lt.s32.totalorder %v106, 4
    %v129 = vsel %vm125, %v109, %v112
    %v130 = vsel %vm128, %v118, 2102212464
    %v131 = vsel %vm127, %v115, %v130
    %v132 = vsel %vm126, %v129, %v131
    %v133 = vsel %vm125, %v112, %v115
    %v134 = vsel %vm128, %v121, 920167782
    %v135 = vsel %vm127, %v118, %v134
    %v136 = vsel %vm126, %v133, %v135
    %v137 = vsel %vm125, %v115, %v118
    %v138 = vsel %vm128, %v124, 1326507024
    %v139 = vsel %vm127, %v121, %v138
    %v140 = vsel %vm126, %v137, %v139
    %v141 = vshll.u32 %v101, 8
    %v142 = vmul.u32.u64.compose %v141, %v140
    %v143 = vextract.low.u32 %v142
    %v144 = vextract.high.u32 %v142
    %v145 = vmul.u32.u64.compose %v141, %v136
    %v146 = vextract.low.u32 %v145
    %v147 = vextract.high.u32 %v145
    %v148 = vmul.u32 %v141, %v132
    %v149 = vadd.s32 %v144, %v146
    %vm150 = vc.u32 %v144, %v146
    %v151 = vadd.s32 %v147, 1
    %v152 = vsel %vm150, %v151, %v147
    %v153 = vadd.s32 %v148, %v152
    %v154 = vadd.s32 %v153, 536870912
    %v155 = vshrl.u32 %v154, 30
    %v156 = vshll.u32 %v155, 30
    %v157 = vsub.s32 %v153, %v156
    %vm158 = vcmp.lt.s32.totalorder %v157, 0
    %v159 = vsub.s32 0, %v157
    %v160 = vsel %vm158, %v159, %v157
    %v161 = vclz %v160
    %v162 = vsub.s32 %v161, 2
    %vm163 = vcmp.gt.s32.totalorder 0, %v162
    %v164 = vsel %vm163, 0, %v162
    %v165 = vsub.s32 32, %v164
    %v166 = vshll.u32 %v157, %v164
    %v167 = vshrl.u32 %v149, %v165
    %v168 = vor.u32 %v166, %v167
    %v169 = vsub.s32 4294967266, %v164
    %v170 = vadd.s32 %v169, 127
    %v171 = vshll.u32 %v170, 23
    %v172 = vor.u32 4788187, %v171
    %v173 = vand.u32 2147483647, %v172
    %v175 = vcvt.s32.f32 %v168
    %v176 = vmul.f32 %v175, %v173
    %v177 = vxor.u32 %v176, 2147483648
    %v178 = vsel %vm95, %v177, %v176
    %v179 = vsub.s32 4, %v155
    %v180 = vsel %vm95, %v179, %v155
    %v181 = vsel %vm94, %v90, %v178
    %v182 = vsel %vm94, 0, %v180
    %v183 = vcosq.f32.pop %v181
    %v184 = vsinq.f32.pop %v181
    %vm185 = vweird.f32 %v90
    %v186 = vadd.s32 %v182, 3
    %v187 = vand.u32 %v186, 3
    %vm188 = vcmp.lt.s32.totalorder %v187, 2
    %vm189 = vcmp.eq.s32.totalorder %v187, 0
    %v190 = vxor.u32 %v184, 2147483648
    %v191 = vsel %vm189, %v183, %v190
    %vm192 = vcmp.eq.s32.totalorder %v187, 2
    %v193 = vxor.u32 %v183, 2147483648
    %v194 = vsel %vm192, %v193, %v184
    %v195 = vsel %vm188, %v191, %v194
    %v196 = vsel %vm185, nan, %v195
    %197 = vst [vmem:[#allocation2] sm:$0xff] %v196
    %v198 = vand.u32 2147483647, %v90
    %vm199 = vcmp.le.f32.partialorder %v198, 0.7853982
    %vm200 = vcmp.lt.s32.totalorder %v90, 0
    %v201 = vand.u32 %v90, 2139095040
    %v202 = vshrl.u32 %v201, 23
    %v203 = vsub.s32 %v202, 127
    %v204 = vand.u32 2147483647, %v90
    %v205 = vand.u32 %v204, 8388607
    %v206 = vor.u32 %v205, 8388608
    %v207 = vsub.s32 0, %v206
    %v208 = vadd.s32 %v203, 1
    %vm209 = vcmp.gt.s32.totalorder %v208, 0
    %v210 = vsel %vm209, %v208, 0
    %v211 = vshrl.u32 %v210, 5
    %v212 = vand.u32 %v210, 31
    %v213 = vsub.s32 32, %v212
    %v214 = vshrl.u32 683565275, %v213
    %v215 = vshll.u32 683565275, %v212
    %v216 = vshrl.u32 2475754826, %v213
    %v217 = vor.u32 %v215, %v216
    %v218 = vshll.u32 2475754826, %v212
    %v219 = vshrl.u32 2131351028, %v213
    %v220 = vor.u32 %v218, %v219
    %v221 = vshll.u32 2131351028, %v212
    %v222 = vshrl.u32 2102212464, %v213
    %v223 = vor.u32 %v221, %v222
    %v224 = vshll.u32 2102212464, %v212
    %v225 = vshrl.u32 920167782, %v213
    %v226 = vor.u32 %v224, %v225
    %v227 = vshll.u32 920167782, %v212
    %v228 = vshrl.u32 1326507024, %v213
    %v229 = vor.u32 %v227, %v228
    %vm230 = vcmp.lt.s32.totalorder %v211, 1
    %vm231 = vcmp.lt.s32.totalorder %v211, 2
    %vm232 = vcmp.lt.s32.totalorder %v211, 3
    %vm233 = vcmp.lt.s32.totalorder %v211, 4
    %v234 = vsel %vm230, %v214, %v217
    %v235 = vsel %vm233, %v223, 2102212464
    %v236 = vsel %vm232, %v220, %v235
    %v237 = vsel %vm231, %v234, %v236
    %v238 = vsel %vm230, %v217, %v220
    %v239 = vsel %vm233, %v226, 920167782
    %v240 = vsel %vm232, %v223, %v239
    %v241 = vsel %vm231, %v238, %v240
    %v242 = vsel %vm230, %v220, %v223
    %v243 = vsel %vm233, %v229, 1326507024
    %v244 = vsel %vm232, %v226, %v243
    %v245 = vsel %vm231, %v242, %v244
    %v246 = vshll.u32 %v206, 8
    %v247 = vmul.u32.u64.compose %v246, %v245
    %v248 = vextract.low.u32 %v247
    %v249 = vextract.high.u32 %v247
    %v250 = vmul.u32.u64.compose %v246, %v241
    %v251 = vextract.low.u32 %v250
    %v252 = vextract.high.u32 %v250
    %v253 = vmul.u32 %v246, %v237
    %v254 = vadd.s32 %v249, %v251
    %vm255 = vc.u32 %v249, %v251
    %v256 = vadd.s32 %v252, 1
    %v257 = vsel %vm255, %v256, %v252
    %v258 = vadd.s32 %v253, %v257
    %v259 = vadd.s32 %v258, 536870912
    %v260 = vshrl.u32 %v259, 30
    %v261 = vshll.u32 %v260, 30
    %v262 = vsub.s32 %v258, %v261
    %vm263 = vcmp.lt.s32.totalorder %v262, 0
    %v264 = vsub.s32 0, %v262
    %v265 = vsel %vm263, %v264, %v262
    %v266 = vclz %v265
    %v267 = vsub.s32 %v266, 2
    %vm268 = vcmp.gt.s32.totalorder 0, %v267
    %v269 = vsel %vm268, 0, %v267
    %v270 = vsub.s32 32, %v269
    %v271 = vshll.u32 %v262, %v269
    %v272 = vshrl.u32 %v254, %v270
    %v273 = vor.u32 %v271, %v272
    %v274 = vsub.s32 4294967266, %v269
    %v275 = vadd.s32 %v274, 127
    %v276 = vshll.u32 %v275, 23
    %v277 = vor.u32 4788187, %v276
    %v278 = vand.u32 2147483647, %v277
    %v280 = vcvt.s32.f32 %v273
    %v281 = vmul.f32 %v280, %v278
    %v282 = vxor.u32 %v281, 2147483648
    %v283 = vsel %vm200, %v282, %v281
    %v284 = vsub.s32 4, %v260
    %v285 = vsel %vm200, %v284, %v260
    %v286 = vsel %vm199, %v90, %v283
    %v287 = vsel %vm199, 0, %v285
    %v288 = vcosq.f32.pop %v286
    %v289 = vsinq.f32.pop %v286
    %vm290 = vweird.f32 %v90
    %v291 = vand.u32 %v287, 3
    %vm292 = vcmp.lt.s32.totalorder %v291, 2
    %vm293 = vcmp.eq.s32.totalorder %v291, 0
    %v294 = vxor.u32 %v289, 2147483648
    %v295 = vsel %vm293, %v288, %v294
    %vm296 = vcmp.eq.s32.totalorder %v291, 2
    %v297 = vxor.u32 %v288, 2147483648
    %v298 = vsel %vm296, %v297, %v289
    %v299 = vsel %vm292, %v295, %v298
    %v300 = vsel %vm290, nan, %v299
    %301 = vst [vmem:[#allocation2 + $0x8] sm:$0xff] %v300
    // Predicated region
    $region10: #{tpu_custom_call.1} parent=1 // pred_check
      _
    $region11: #{tpu_custom_call.1} parent=1 // pred_check_branch
      %303 = sbr.rel (0) target = $region13
    $region12: #{tpu_custom_call.1} parent=1 // pred_region
      %s305 = ssub.s32 256, 256
      %306 = vsyncadd [#allocation3], %s305
      %s308 = sshll.u32 [#allocation2], 4
      %s309 = int_to_ptr.vmem [resolvable:$true] %s308
      %311 = dma.vmem_to_hbm [thread:$0]  %s309, 256, %s2, [#allocation3]
    $region13: #{tpu_custom_call.1} parent=1 // pred_fallthru
      _
    // Predicated region
    $region14: #{tpu_custom_call.1} parent=1 // pred_check
      _
    $region15: #{tpu_custom_call.1} parent=1 // pred_check_branch
      %313 = sbr.rel (0) target = $region17
    $region16: #{tpu_custom_call.1} parent=1 // pred_region
      %314 = dma.done [#allocation3], 256
    $region17: #{tpu_custom_call.1} parent=1 // pred_fallthru
      _
    %315 = vsyncpa [#allocation3], 1

</llo_original>
